<compile_context>
chip_gen: v7x
topology: tpu7x:2x2x1
jax: 0.10.0
libtpu: 0.0.40
codegen_flags: <defaults>
</compile_context>

<pallas_src>
import math
import functools

import jax
import jax.numpy as jnp
from jax.experimental import pallas as pl
from jax.experimental.pallas import tpu as pltpu


# ----------------------------------------------------------------------------
# Kernels
# ----------------------------------------------------------------------------
def _pe_add_kernel(x_ref, pe_ref, o_ref, *, batch):
    # x_ref / o_ref: (t_s, B*D) lane-dense tiles; pe_ref: (t_s, D)
    pe_wide = jnp.tile(pe_ref[...], (1, batch))        # (t_s, B*D), VMEM-resident
    o_ref[...] = x_ref[...] + pe_wide


def _pe_add_dropout_kernel(x_ref, pe_ref, u_ref, o_ref, *, p, batch):
    # Inverted dropout: keep with prob (1-p), scale kept values by 1/(1-p).
    pe_wide = jnp.tile(pe_ref[...], (1, batch))
    y = x_ref[...] + pe_wide                            # input dtype
    keep = u_ref[...] >= p                              # one full-tile compare
    scale = 1.0 / (1.0 - p)
    o_ref[...] = jnp.where(keep, y * scale, 0.0).astype(o_ref.dtype)


# ----------------------------------------------------------------------------
# Parameter construction (deterministic, mirrors PyTorch __init__)
# ----------------------------------------------------------------------------
def make_pe_table(d_model: int, max_len: int) -> jnp.ndarray:
    """pe of shape (max_len, d_model): the (max_len, 1, d_model) PyTorch buffer
    with the singleton batch dim squeezed out."""
    position = jnp.arange(0, max_len, dtype=jnp.float32)[:, None]            # (L, 1)
    div_term = jnp.exp(
        jnp.arange(0, d_model, 2, dtype=jnp.float32) * (-math.log(10000.0) / d_model)
    )                                                                         # (D/2,)
    angles = position * div_term                                              # (L, D/2)
    pe = jnp.zeros((max_len, d_model), dtype=jnp.float32)
    pe = pe.at[:, 0::2].set(jnp.sin(angles))
    pe = pe.at[:, 1::2].set(jnp.cos(angles))
    return pe


# ----------------------------------------------------------------------------
# Tiling helper
# ----------------------------------------------------------------------------
def _choose_tile_s(seq_len: int, row_bytes: int, itemsize: int,
                   target_bytes: int = 4 * 1024 * 1024,
                   desired_tiles: int = 8) -> int:
    """Seq-tile size: ~target_bytes per x tile, rounded to the dtype's sublane
    multiple, and capped so large inputs yield a multi-tile grid (pipelining +
    v7x megacore sharding)."""
    # sublane multiple: 8 for 4-byte, 16 for 2-byte, 32 for 1-byte dtypes
    sub = max(8, 8 * (4 // max(itemsize, 1)))
    if seq_len <= sub:
        return seq_len                                   # full array (block == dims)

    def round_up(v, m):
        return ((v + m - 1) // m) * m

    rows_from_bytes = max(sub, (target_bytes // max(row_bytes, 1)) // sub * sub)
    rows_from_split = max(sub, round_up(pl.cdiv(seq_len, desired_tiles), sub))
    return min(seq_len, rows_from_bytes, rows_from_split)


# ----------------------------------------------------------------------------
# Wrapper
# ----------------------------------------------------------------------------
def positional_encoding(x, pe, *, p: float = 0.1, training: bool = False,
                        seed: int = 0):
    """x: (S, B, D); pe: (max_len, D).  Returns dropout(x + pe[:S]) like the module."""
    S, B, D = x.shape
    itemsize = x.dtype.itemsize
    pe_slice = pe[:S].astype(x.dtype)            # (S, D); single small cast
    x2 = x.reshape(S, B * D)                     # contiguous merge -> lane-dense

    t_s = _choose_tile_s(S, B * D * itemsize, itemsize)
    grid = (pl.cdiv(S, t_s),)

    out_shape = jax.ShapeDtypeStruct((S, B * D), x.dtype)
    compiler_params = pltpu.CompilerParams(
        dimension_semantics=("parallel",),       # shards seq tiles across TCs on v7x
        vmem_limit_bytes=40 * 1024 * 1024,
    )

    if (not training) or p <= 0.0:
        cost = pl.CostEstimate(
            flops=S * B * D,
            transcendentals=0,
            bytes_accessed=(2 * S * B * D + S * D) * itemsize,
        )
        out2 = pl.pallas_call(
            functools.partial(_pe_add_kernel, batch=B),
            out_shape=out_shape,
            grid_spec=pltpu.PrefetchScalarGridSpec(
                num_scalar_prefetch=0,
                grid=grid,
                in_specs=[
                    pl.BlockSpec((t_s, B * D), lambda i: (i, 0)),
                    pl.BlockSpec((t_s, D), lambda i: (i, 0)),
                ],
                out_specs=pl.BlockSpec((t_s, B * D), lambda i: (i, 0)),
            ),
            compiler_params=compiler_params,
            cost_estimate=cost,
        )(x2, pe_slice)
        return out2.reshape(S, B, D)

    if not (0.0 < p < 1.0):
        raise ValueError("dropout p must be in [0, 1) for the training path")

    # Portable dropout randomness: uniform f32 per element drawn in the wrapper.
    # TODO(synk): will not bit-match torch.nn.Dropout's RNG stream; eval-mode
    # semantics match exactly.
    key = jax.random.PRNGKey(seed)
    u = jax.random.uniform(key, (S, B * D), dtype=jnp.float32)

    cost = pl.CostEstimate(
        flops=3 * S * B * D,
        transcendentals=0,
        bytes_accessed=(2 * S * B * D + S * D) * itemsize + S * B * D * 4,
    )
    out2 = pl.pallas_call(
        functools.partial(_pe_add_dropout_kernel, p=p, batch=B),
        out_shape=out_shape,
        grid_spec=pltpu.PrefetchScalarGridSpec(
            num_scalar_prefetch=0,
            grid=grid,
            in_specs=[
                pl.BlockSpec((t_s, B * D), lambda i: (i, 0)),
                pl.BlockSpec((t_s, D), lambda i: (i, 0)),
                pl.BlockSpec((t_s, B * D), lambda i: (i, 0)),
            ],
            out_specs=pl.BlockSpec((t_s, B * D), lambda i: (i, 0)),
        ),
        compiler_params=compiler_params,
        cost_estimate=cost,
    )(x2, pe_slice, u)
    return out2.reshape(S, B, D)


# ----------------------------------------------------------------------------
# Demo / self-check
# ----------------------------------------------------------------------------
if __name__ == "__main__":
    # --- small config (toy-scale version of the module defaults) -------------
    S, B, D = 8, 2, 32
    MAX_LEN = 64
    key = jax.random.PRNGKey(0)
    x = jax.random.normal(key, (S, B, D), dtype=jnp.float32)
    pe = make_pe_table(D, MAX_LEN)

    out = jax.block_until_ready(positional_encoding(x, pe, p=0.1, training=False))
    ref = x + pe[:S][:, None, :]
    assert out.shape == (S, B, D)
    assert jnp.allclose(out, ref, atol=1e-6, rtol=1e-6)

    # training-mode forward: inverted dropout (statistical check)
    p = 0.1
    out_tr = jax.block_until_ready(
        positional_encoding(x, pe, p=p, training=True, seed=123))
    assert out_tr.shape == (S, B, D)
    scaled_ref = ref / (1.0 - p)
    ok = jnp.where(
        out_tr != 0,
        jnp.abs(out_tr - scaled_ref) <= 1e-4 * (1.0 + jnp.abs(scaled_ref)),
        True,
    )
    assert bool(jnp.all(ok))
    keep_frac = float(jnp.mean((out_tr != 0).astype(jnp.float32)))
    assert abs(keep_frac - (1.0 - p)) < 0.1

    # --- larger config: exercises the multi-tile pipelined grid --------------
    S2, B2, D2 = 1024, 4, 256
    x_big = jax.random.normal(jax.random.PRNGKey(1), (S2, B2, D2), dtype=jnp.float32)
    pe_big = make_pe_table(D2, S2)
    out_big = jax.block_until_ready(positional_encoding(x_big, pe_big, training=False))
    ref_big = x_big + pe_big[:S2][:, None, :]
    assert jnp.allclose(out_big, ref_big, atol=1e-6, rtol=1e-6)

    print("KERNEL_OK")
</pallas_src>

<mosaic_0001>
module attributes {stable_mosaic.version = 11 : i64} {
  func.func @_pe_add_kernel(%arg0: i32, %arg1: memref<8x64xf32, #tpu.memory_space<vmem>>, %arg2: memref<8x32xf32, #tpu.memory_space<vmem>>, %arg3: memref<8x64xf32, #tpu.memory_space<vmem>>) attributes {dimension_semantics = [#tpu.dimension_semantics<parallel>], iteration_bounds = array<i64: 1>, scalar_prefetch = 0 : i64, scratch_operands = 0 : i64, tpu.core_type = #tpu.core_type<tc>, window_params = [{transform_indices = @transform_0, window_bounds = array<i64: 8, 64>}, {transform_indices = @transform_1, window_bounds = array<i64: 8, 32>}, {transform_indices = @transform_2, window_bounds = array<i64: 8, 64>}]} {
    %c0 = arith.constant 0 : index
    %c0_0 = arith.constant 0 : index
    %0 = vector.load %arg2[%c0, %c0_0] : memref<8x32xf32, #tpu.memory_space<vmem>>, vector<8x32xf32>
    %1 = tpu.concatenate %0, %0 in 1 : vector<8x32xf32>, vector<8x32xf32> -> vector<8x64xf32>
    %c0_1 = arith.constant 0 : index
    %c0_2 = arith.constant 0 : index
    %2 = vector.load %arg1[%c0_1, %c0_2] : memref<8x64xf32, #tpu.memory_space<vmem>>, vector<8x64xf32>
    %3 = arith.addf %2, %1 : vector<8x64xf32>
    %c0_3 = arith.constant 0 : index
    %c0_4 = arith.constant 0 : index
    %4 = vector.load %arg3[%c0_3, %c0_4] : memref<8x64xf32, #tpu.memory_space<vmem>>, vector<8x64xf32>
    tpu.vector_store %arg3[%c0_3, %c0_4], %3 {strides = array<i32>} : memref<8x64xf32, #tpu.memory_space<vmem>>, vector<8x64xf32>,
    return
  }
  func.func @transform_0(%arg0: i32) -> (i32, i32) {
    %c0_i32 = arith.constant 0 : i32
    %c0_i32_0 = arith.constant 0 : i32
    return %arg0, %c0_i32 : i32, i32
  }
  func.func @transform_1(%arg0: i32) -> (i32, i32) {
    %c0_i32 = arith.constant 0 : i32
    %c0_i32_0 = arith.constant 0 : i32
    return %arg0, %c0_i32 : i32, i32
  }
  func.func @transform_2(%arg0: i32) -> (i32, i32) {
    %c0_i32 = arith.constant 0 : i32
    %c0_i32_0 = arith.constant 0 : i32
    return %arg0, %c0_i32 : i32, i32
  }
}

</mosaic_0001>

<llo_original>
// kernel: tpu_custom_call.1
$region0: #{tpu_custom_call.1}
  #allocation0 [shape = 'u32[]', space=smem, size = 0x4, offset = 0x4, fixed_abs, tag = 'smem constant byte address 0x4 - core index']
  #allocation1 [shape = 'u32[144,128]{1,0:T(1,128)}', space=vmem, size = 0x12000, scoped, tag = 'internal scratch']
  %s0 = inlined_call_operand.hbm [shape: f32[8,64], index: 0, kind: input, shape index: {}]
  %s1 = inlined_call_operand.hbm [shape: f32[8,32], index: 1, kind: input, shape index: {}]
  %s2 = inlined_call_operand.hbm [shape: f32[8,64], index: 2, kind: output, shape index: {}]
  %s3 = sld [smem:[#allocation0]]
  $region26: #{tpu_custom_call.1} parent=0
    _
  %s5 = ssub.s32 1, %s3
  %s6 = scalar_select 0, %s5, %s3
  $region1: #{tpu_custom_call.1} parent=0
    #allocation2 [shape = 'u8[4096]{0}', space=vmem, size = 0x1000, scoped, tag = 'input window, operand 0, single buffered']
    #allocation3 [shape = 's32[1]{0}', space=sflag, size = 0x4, scoped, tag = 'scoped memory for tpu_custom_call.1']
    #allocation4 [shape = 's32[1]{0}', space=sflag, size = 0x4, scoped, tag = 'scoped memory for tpu_custom_call.1']
    #allocation5 [shape = 'u8[4096]{0}', space=vmem, size = 0x1000, scoped, tag = 'input window, operand 1, single buffered']
    #allocation6 [shape = 's32[1]{0}', space=sflag, size = 0x4, scoped, tag = 'scoped memory for tpu_custom_call.1']
    #allocation7 [shape = 'u8[4096]{0}', space=vmem, size = 0x1000, scoped, tag = 'output window, operand 0, single buffered']
    %7 = vsyncpa [#allocation3], 0
    %8 = vsyncpa [#allocation6], 0
    %9 = vsyncpa [#allocation4], 0
    // Predicated region
    $region2: #{tpu_custom_call.1} parent=1 // pred_check
      _
    $region3: #{tpu_custom_call.1} parent=1 // pred_check_branch
      %11 = sbr.rel (0) target = $region5
    $region4: #{tpu_custom_call.1} parent=1 // pred_region
      %s13 = ssub.s32 128, 128
      %14 = vsyncadd [#allocation3], %s13
      %s16 = sshll.u32 [#allocation2], 4
      %s17 = int_to_ptr.vmem [resolvable:$true] %s16
      %19 = dma.hbm_to_vmem [thread:$0]  %s0, 128, %s17, [#allocation3]
    $region5: #{tpu_custom_call.1} parent=1 // pred_fallthru
      _
    // Predicated region
    $region6: #{tpu_custom_call.1} parent=1 // pred_check
      _
    $region7: #{tpu_custom_call.1} parent=1 // pred_check_branch
      %21 = sbr.rel (0) target = $region9
    $region8: #{tpu_custom_call.1} parent=1 // pred_region
      %s23 = ssub.s32 128, 128
      %24 = vsyncadd [#allocation6], %s23
      %s26 = sshll.u32 [#allocation5], 4
      %s27 = int_to_ptr.vmem [resolvable:$true] %s26
      %29 = dma.hbm_to_vmem [thread:$0]  %s1, 128, %s27, [#allocation6]
    $region9: #{tpu_custom_call.1} parent=1 // pred_fallthru
      _
    // Predicated region
    $region10: #{tpu_custom_call.1} parent=1 // pred_check
      _
    $region11: #{tpu_custom_call.1} parent=1 // pred_check_branch
      %31 = sbr.rel (0) target = $region13
    $region12: #{tpu_custom_call.1} parent=1 // pred_region
      %32 = dma.done [#allocation3], 128
    $region13: #{tpu_custom_call.1} parent=1 // pred_fallthru
      _
    // Predicated region
    $region14: #{tpu_custom_call.1} parent=1 // pred_check
      _
    $region15: #{tpu_custom_call.1} parent=1 // pred_check_branch
      %34 = sbr.rel (0) target = $region17
    $region16: #{tpu_custom_call.1} parent=1 // pred_region
      %35 = dma.done [#allocation6], 128
    $region17: #{tpu_custom_call.1} parent=1 // pred_fallthru
      _
    %v36 = vld [vmem:[#allocation5] sm:$0xff]
    %38 = vrot.lane.b32.xlu0 %v36, 32
    %v39 = vpop.permute.xlu0 %38
    %vm41 = vcmask 261120
    %v42 = vsel %vm41, %v36, %v39
    %v43 = vld [vmem:[#allocation2] sm:$0xff]
    %v44 = vadd.f32 %v43, %v42
    %vm45 = vcmask 523264
    %46 = vst.msk [vmem:[#allocation7] sm:$0xff] %vm45, %v44
    // Predicated region
    $region18: #{tpu_custom_call.1} parent=1 // pred_check
      _
    $region19: #{tpu_custom_call.1} parent=1 // pred_check_branch
      %48 = sbr.rel (0) target = $region21
    $region20: #{tpu_custom_call.1} parent=1 // pred_region
      %s50 = ssub.s32 128, 128
      %51 = vsyncadd [#allocation4], %s50
      %s53 = sshll.u32 [#allocation7], 4
      %s54 = int_to_ptr.vmem [resolvable:$true] %s53
      %56 = dma.vmem_to_hbm [thread:$0]  %s54, 128, %s2, [#allocation4]
    $region21: #{tpu_custom_call.1} parent=1 // pred_fallthru
      _
    // Predicated region
    $region22: #{tpu_custom_call.1} parent=1 // pred_check
      _
    $region23: #{tpu_custom_call.1} parent=1 // pred_check_branch
      %58 = sbr.rel (0) target = $region25
    $region24: #{tpu_custom_call.1} parent=1 // pred_region
      %59 = dma.done [#allocation4], 128
    $region25: #{tpu_custom_call.1} parent=1 // pred_fallthru
      _
    %60 = vsyncpa [#allocation3], 1
    %61 = vsyncpa [#allocation6], 1
    %62 = vsyncpa [#allocation4], 1

</llo_original>
